<compile_context>
chip_gen: v7x
topology: tpu7x:2x2x1
jax: 0.10.0
libtpu: 0.0.40
codegen_flags: <defaults>
</compile_context>

<pallas_src>
import jax
import jax.numpy as jnp
import numpy as np
from jax import lax
from jax.experimental import pallas as pl
from jax.experimental.pallas import tpu as pltpu


# ---------------------------------------------------------------------------
# Helpers
# ---------------------------------------------------------------------------
def _vmem_limit_bytes() -> int:
    """~75% of physical VMEM: ~48 MiB on v7x (64 MiB parts), ~96 MiB on v5e/v6e."""
    cap = 128 * 1024 * 1024
    try:
        info = pltpu.get_tpu_info()
        cap = int(getattr(info, "vmem_capacity_bytes", cap) or cap)
    except Exception:
        pass
    return max(32 * 1024 * 1024, (cap * 3) // 4)


def _pick_n_tile(n: int, c: int) -> int:
    """Largest multiple-of-8 divisor of n at or below a VMEM-friendly target."""
    # ~2 MiB of f32 activations per tile: big enough to amortize the ~0.35 us
    # per-step overhead and hide the x-block DMA, small enough to leave plenty
    # of headroom even in v7x's 64 MiB VMEM with double-buffered x/y blocks.
    target = max(256, min(4096, (2 * 1024 * 1024) // (4 * max(c, 1))))
    if n <= target:
        return n
    start = target - (target % 8)
    for t in range(start, 7, -8):
        if n % t == 0:
            return t
    return n  # no aligned divisor: single untiled block (see TODO above)


# ---------------------------------------------------------------------------
# Pass 1: per-batch cross-covariance stats + fused softmax/projection matrix M
# ---------------------------------------------------------------------------
def _xca_stats_kernel(x_ref, wq_ref, wk_ref, bq_ref, bk_ref, scale_q_ref,
                      mask_ref, wproj_ref, m_ref, cov_ref, ssq_q_ref, ssq_k_ref):
    t = pl.program_id(1)

    @pl.when(t == 0)
    def _init():
        cov_ref[...] = jnp.zeros_like(cov_ref)
        ssq_q_ref[...] = jnp.zeros_like(ssq_q_ref)
        ssq_k_ref[...] = jnp.zeros_like(ssq_k_ref)

    # Cast the activation tile after the VMEM load (no wrapper-side HBM pass).
    x = x_ref[0].astype(jnp.bfloat16)                                   # (tn, C)
    q = jnp.dot(x, wq_ref[...], preferred_element_type=jnp.float32) + bq_ref[...]
    k = jnp.dot(x, wk_ref[...], preferred_element_type=jnp.float32) + bk_ref[...]

    # F.normalize(dim=-1) in the (B, H, d, N) view == per-channel L2 norm over
    # the token axis; accumulate sum-of-squares and the raw cross-covariance
    # across N tiles (normalization factors are applied once at the end).
    ssq_q_ref[...] += jnp.sum(q * q, axis=0, keepdims=True)             # (1, C)
    ssq_k_ref[...] += jnp.sum(k * k, axis=0, keepdims=True)             # (1, C)
    cov_ref[...] += lax.dot_general(
        q.astype(jnp.bfloat16), k.astype(jnp.bfloat16),
        dimension_numbers=(((0,), (0,)), ((), ())),    # contract the token axis
        preferred_element_type=jnp.float32)                             # (C, C)

    @pl.when(t == pl.num_programs(1) - 1)
    def _finalize():
        dim = cov_ref.shape[0]
        eps_sq = jnp.float32(1e-24)   # 1/max(norm, 1e-12) == rsqrt(max(ssq, 1e-24))
        q_scale = lax.rsqrt(jnp.maximum(ssq_q_ref[...], eps_sq)) * scale_q_ref[...]
        k_scale = lax.rsqrt(jnp.maximum(ssq_k_ref[...], eps_sq))        # (1, C)

        # attn logits: q_scale[i] * k_scale[j] * cov[i, j].  The row factor needs
        # a (C, 1) column; build it from the lane-major (1, C) vector with a tiny
        # identity matmul (guaranteed lowering, once per batch) instead of a
        # sublane<->lane relayout.
        eye = (lax.broadcasted_iota(jnp.int32, (dim, dim), 0) ==
               lax.broadcasted_iota(jnp.int32, (dim, dim), 1)).astype(jnp.float32)
        q_scale_col = lax.dot_general(
            eye, q_scale, dimension_numbers=(((1,), (1,)), ((), ())),
            preferred_element_type=jnp.float32)                         # (C, 1)

        # Host-precomputed per-head block-diagonal additive mask (0 / -1e30);
        # restricting the softmax to each head's d x d block == per-head softmax.
        logits = cov_ref[...] * k_scale * q_scale_col + mask_ref[...]
        p = jnp.exp(logits - jnp.max(logits, axis=-1, keepdims=True))
        attn = p / jnp.sum(p, axis=-1, keepdims=True)    # exact; once per batch

        # Fused epilogue: M = attn^T @ w_proj, so pass 2 is just y = v @ M + b,
        # saving a full (N, C) x (C, C) MXU GEMM and the (N, C) f32 intermediate.
        m = lax.dot_general(
            attn.astype(jnp.bfloat16), wproj_ref[...],
            dimension_numbers=(((0,), (0,)), ((), ())),
            preferred_element_type=jnp.float32)                         # (C, C)
        m_ref[0] = m.astype(m_ref.dtype)


# ---------------------------------------------------------------------------
# Pass 2: per-tile v projection + fused output GEMM (lane-dense (tn, C) stores)
# ---------------------------------------------------------------------------
def _xca_apply_kernel(x_ref, wv_ref, bv_ref, bproj_ref, m_ref, o_ref):
    x = x_ref[0].astype(jnp.bfloat16)                                   # (tn, C)
    v = jnp.dot(x, wv_ref[...], preferred_element_type=jnp.float32) + bv_ref[...]
    y = jnp.dot(v.astype(jnp.bfloat16), m_ref[0],
                preferred_element_type=jnp.float32) + bproj_ref[...]
    o_ref[0] = y.astype(o_ref.dtype)


# ---------------------------------------------------------------------------
# Wrapper
# ---------------------------------------------------------------------------
def prepare_xca_params(w_qkv, b_qkv, temperature, w_proj, b_proj, *, num_heads):
    """One-time parameter prep (casts / splits / mask) -- done at init, not per call."""
    dim = w_qkv.shape[1] // 3
    assert dim % num_heads == 0
    head_dim = dim // num_heads

    w_qkv = jnp.asarray(w_qkv)
    b_qkv = jnp.asarray(b_qkv).reshape(3 * dim)

    head_ids = jnp.arange(dim, dtype=jnp.int32) // head_dim
    mask = jnp.where(head_ids[:, None] == head_ids[None, :],
                     jnp.float32(0.0), jnp.float32(-1e30))              # (C, C)

    return dict(
        dim=dim,
        num_heads=num_heads,
        w_q=w_qkv[:, 0 * dim:1 * dim].astype(jnp.bfloat16),
        w_k=w_qkv[:, 1 * dim:2 * dim].astype(jnp.bfloat16),
        w_v=w_qkv[:, 2 * dim:3 * dim].astype(jnp.bfloat16),
        b_q=b_qkv[0 * dim:1 * dim].astype(jnp.float32).reshape(1, dim),
        b_k=b_qkv[1 * dim:2 * dim].astype(jnp.float32).reshape(1, dim),
        b_v=b_qkv[2 * dim:3 * dim].astype(jnp.float32).reshape(1, dim),
        w_proj=jnp.asarray(w_proj).astype(jnp.bfloat16),
        b_proj=jnp.asarray(b_proj).astype(jnp.float32).reshape(1, dim),
        # Per-head temperature folded into a lane-dense per-channel (1, C) scale.
        scale_q=jnp.repeat(
            jnp.asarray(temperature).reshape(num_heads).astype(jnp.float32),
            head_dim).reshape(1, dim),
        mask=mask,
    )


def cross_covariance_attn(x, params):
    B, N, C = x.shape
    assert C == params["dim"]
    tn = _pick_n_tile(N, C)
    n_tiles = N // tn
    vmem_limit = _vmem_limit_bytes()

    def _const_spec(shape):
        # Grid-invariant operand: fetched once, single-buffered (saves VMEM).
        return pl.BlockSpec(shape, lambda b, t: (0,) * len(shape),
                            pipeline_mode=pl.Buffered(1))

    # ---- Pass 1: per-batch fused matrix M = attn^T @ w_proj -----------------
    m = pl.pallas_call(
        _xca_stats_kernel,
        out_shape=jax.ShapeDtypeStruct((B, C, C), jnp.bfloat16),
        grid_spec=pltpu.PrefetchScalarGridSpec(
            num_scalar_prefetch=0,
            grid=(B, n_tiles),
            in_specs=[
                pl.BlockSpec((1, tn, C), lambda b, t: (b, t, 0)),   # x tile
                _const_spec((C, C)),                                # w_q
                _const_spec((C, C)),                                # w_k
                _const_spec((1, C)),                                # b_q
                _const_spec((1, C)),                                # b_k
                _const_spec((1, C)),                                # temperature scale
                _const_spec((C, C)),                                # block-diag mask
                _const_spec((C, C)),                                # w_proj
            ],
            out_specs=pl.BlockSpec((1, C, C), lambda b, t: (b, 0, 0)),
            scratch_shapes=[pltpu.VMEM((C, C), jnp.float32),        # cov accumulator
                            pltpu.VMEM((1, C), jnp.float32),        # ssq_q
                            pltpu.VMEM((1, C), jnp.float32)],       # ssq_k
        ),
        compiler_params=pltpu.CompilerParams(
            dimension_semantics=("parallel", "arbitrary"),
            vmem_limit_bytes=vmem_limit),
    )(x, params["w_q"], params["w_k"], params["b_q"], params["b_k"],
      params["scale_q"], params["mask"], params["w_proj"])

    # ---- Pass 2: y = (x @ w_v + b_v) @ M + b_proj, fully parallel grid -------
    y = pl.pallas_call(
        _xca_apply_kernel,
        out_shape=jax.ShapeDtypeStruct((B, N, C), x.dtype),
        grid_spec=pltpu.PrefetchScalarGridSpec(
            num_scalar_prefetch=0,
            grid=(B, n_tiles),
            in_specs=[
                pl.BlockSpec((1, tn, C), lambda b, t: (b, t, 0)),   # x tile
                _const_spec((C, C)),                                # w_v
                _const_spec((1, C)),                                # b_v
                _const_spec((1, C)),                                # b_proj
                pl.BlockSpec((1, C, C), lambda b, t: (b, 0, 0)),    # M (per batch)
            ],
            out_specs=pl.BlockSpec((1, tn, C), lambda b, t: (b, t, 0)),
        ),
        compiler_params=pltpu.CompilerParams(
            dimension_semantics=("parallel", "parallel"),
            vmem_limit_bytes=vmem_limit),
    )(x, params["w_v"], params["b_v"], params["b_proj"], m)
    return y


# ---------------------------------------------------------------------------
# Pure-JAX f32 reference mirroring the PyTorch forward exactly.
# ---------------------------------------------------------------------------
def ref_cross_covariance_attn(x, w_qkv, b_qkv, temperature, w_proj, b_proj, *, num_heads):
    B, N, C = x.shape
    d = C // num_heads
    qkv = x @ w_qkv + b_qkv.reshape(-1)                                  # (B, N, 3C)
    qkv = qkv.reshape(B, N, 3, num_heads, d).transpose(2, 0, 3, 4, 1)    # (3,B,H,d,N)
    q, k, v = qkv[0], qkv[1], qkv[2]

    def l2norm(t):
        return t / jnp.maximum(jnp.linalg.norm(t, axis=-1, keepdims=True), 1e-12)

    q = l2norm(q) * temperature.reshape(1, num_heads, 1, 1)
    k = l2norm(k)
    attn = jax.nn.softmax(q @ jnp.swapaxes(k, -1, -2), axis=-1)          # (B,H,d,d)
    out = attn @ v                                                       # (B,H,d,N)
    out = out.transpose(0, 3, 1, 2).reshape(B, N, C)
    return out @ w_proj + b_proj.reshape(-1)


if __name__ == "__main__":
    B, N, C, H = 2, 8, 32, 4  # batch, tokens, channels, heads (dim % heads == 0)

    key = jax.random.PRNGKey(0)
    kx, k1, k2, k3, k4, k5 = jax.random.split(key, 6)

    x = jax.random.normal(kx, (B, N, C), jnp.float32)

    # Deterministic synthetic parameters (shapes implied by the module __init__,
    # qkv_bias=True). nn.Linear weights are stored pre-transposed: (in, out).
    w_qkv = jax.random.normal(k1, (C, 3 * C), jnp.float32) * 0.05
    b_qkv = jax.random.normal(k2, (1, 3 * C), jnp.float32) * 0.05
    temperature = jax.random.uniform(k3, (H, 1, 1), jnp.float32, 0.5, 1.5)
    w_proj = jax.random.normal(k4, (C, C), jnp.float32) * 0.05
    b_proj = jax.random.normal(k5, (1, C), jnp.float32) * 0.05

    params = prepare_xca_params(w_qkv, b_qkv, temperature, w_proj, b_proj,
                                num_heads=H)
    out = cross_covariance_attn(x, params)
    out = jax.block_until_ready(out)

    ref = ref_cross_covariance_attn(
        x, w_qkv, b_qkv, temperature, w_proj, b_proj, num_heads=H)
    # bf16 MXU operands => compare against the f32 reference at bf16 tolerance.
    np.testing.assert_allclose(np.asarray(out), np.asarray(ref),
                               rtol=2e-2, atol=2e-2)

    print("KERNEL_OK")
</pallas_src>

<mosaic_0001>
module attributes {stable_mosaic.version = 11 : i64} {
  func.func @_xca_stats_kernel(%arg0: i32, %arg1: i32, %arg2: memref<1x8x32xf32, #tpu.memory_space<vmem>>, %arg3: memref<32x32xbf16, #tpu.memory_space<vmem>>, %arg4: memref<32x32xbf16, #tpu.memory_space<vmem>>, %arg5: memref<1x32xf32, #tpu.memory_space<vmem>>, %arg6: memref<1x32xf32, #tpu.memory_space<vmem>>, %arg7: memref<1x32xf32, #tpu.memory_space<vmem>>, %arg8: memref<32x32xf32, #tpu.memory_space<vmem>>, %arg9: memref<32x32xbf16, #tpu.memory_space<vmem>>, %arg10: memref<1x32x32xbf16, #tpu.memory_space<vmem>>, %arg11: memref<32x32xf32, #tpu.memory_space<vmem>>, %arg12: memref<1x32xf32, #tpu.memory_space<vmem>>, %arg13: memref<1x32xf32, #tpu.memory_space<vmem>>) attributes {dimension_semantics = [#tpu.dimension_semantics<parallel>, #tpu.dimension_semantics<arbitrary>], iteration_bounds = array<i64: 2, 1>, scalar_prefetch = 0 : i64, scratch_operands = 3 : i64, tpu.core_type = #tpu.core_type<tc>, window_params = [{transform_indices = @transform_0, window_bounds = array<i64: 1, 8, 32>}, {pipeline_mode = #tpu.pipeline_mode<synchronous>, transform_indices = @transform_1, window_bounds = array<i64: 32, 32>}, {pipeline_mode = #tpu.pipeline_mode<synchronous>, transform_indices = @transform_2, window_bounds = array<i64: 32, 32>}, {pipeline_mode = #tpu.pipeline_mode<synchronous>, transform_indices = @transform_3, window_bounds = array<i64: 1, 32>}, {pipeline_mode = #tpu.pipeline_mode<synchronous>, transform_indices = @transform_4, window_bounds = array<i64: 1, 32>}, {pipeline_mode = #tpu.pipeline_mode<synchronous>, transform_indices = @transform_5, window_bounds = array<i64: 1, 32>}, {pipeline_mode = #tpu.pipeline_mode<synchronous>, transform_indices = @transform_6, window_bounds = array<i64: 32, 32>}, {pipeline_mode = #tpu.pipeline_mode<synchronous>, transform_indices = @transform_7, window_bounds = array<i64: 32, 32>}, {transform_indices = @transform_8, window_bounds = array<i64: 1, 32, 32>}]} {
    %c0_i32 = arith.constant 0 : i32
    %0 = arith.cmpi eq, %arg1, %c0_i32 : i32
    %1 = arith.extui %0 : i1 to i32
    %c0_i32_0 = arith.constant 0 : i32
    %2 = arith.cmpi ne, %1, %c0_i32_0 : i32
    scf.if %2 {
      %cst_29 = arith.constant 0.000000e+00 : f32
      %37 = vector.broadcast %cst_29 : f32 to vector<32x32xf32>
      %c0_30 = arith.constant 0 : index
      %c0_31 = arith.constant 0 : index
      %38 = vector.load %arg11[%c0_30, %c0_31] : memref<32x32xf32, #tpu.memory_space<vmem>>, vector<32x32xf32>
      tpu.vector_store %arg11[%c0_30, %c0_31], %37 {strides = array<i32>} : memref<32x32xf32, #tpu.memory_space<vmem>>, vector<32x32xf32>,
      %cst_32 = arith.constant 0.000000e+00 : f32
      %39 = vector.broadcast %cst_32 : f32 to vector<1x32xf32>
      %c0_33 = arith.constant 0 : index
      %c0_34 = arith.constant 0 : index
      %40 = vector.load %arg12[%c0_33, %c0_34] : memref<1x32xf32, #tpu.memory_space<vmem>>, vector<1x32xf32>
      tpu.vector_store %arg12[%c0_33, %c0_34], %39 {strides = array<i32>} : memref<1x32xf32, #tpu.memory_space<vmem>>, vector<1x32xf32>,
      %cst_35 = arith.constant 0.000000e+00 : f32
      %41 = vector.broadcast %cst_35 : f32 to vector<1x32xf32>
      %c0_36 = arith.constant 0 : index
      %c0_37 = arith.constant 0 : index
      %42 = vector.load %arg13[%c0_36, %c0_37] : memref<1x32xf32, #tpu.memory_space<vmem>>, vector<1x32xf32>
      tpu.vector_store %arg13[%c0_36, %c0_37], %41 {strides = array<i32>} : memref<1x32xf32, #tpu.memory_space<vmem>>, vector<1x32xf32>,
    } else {
    }
    %c0 = arith.constant 0 : index
    %c0_1 = arith.constant 0 : index
    %c0_2 = arith.constant 0 : index
    %3 = vector.load %arg2[%c0, %c0_1, %c0_2] : memref<1x8x32xf32, #tpu.memory_space<vmem>>, vector<1x8x32xf32>
    %4 = vector.shape_cast %3 : vector<1x8x32xf32> to vector<8x32xf32>
    %5 = arith.truncf %4 : vector<8x32xf32> to vector<8x32xbf16>
    %c0_3 = arith.constant 0 : index
    %c0_4 = arith.constant 0 : index
    %6 = vector.load %arg3[%c0_3, %c0_4] : memref<32x32xbf16, #tpu.memory_space<vmem>>, vector<32x32xbf16>
    %cst = arith.constant dense<0.000000e+00> : vector<8x32xf32>
    %7 = tpu.matmul %5, %6, %cst {dimension_numbers = #tpu.dot_dimension_numbers<[1], [0], [0], [1], [0, 0, 1, 1], [], []>} : vector<8x32xbf16>, vector<32x32xbf16>, vector<8x32xf32> -> vector<8x32xf32>
    %c0_5 = arith.constant 0 : index
    %c0_6 = arith.constant 0 : index
    %8 = vector.load %arg5[%c0_5, %c0_6] : memref<1x32xf32, #tpu.memory_space<vmem>>, vector<1x32xf32>
    %9 = vector.broadcast %8 : vector<1x32xf32> to vector<8x32xf32>
    %10 = arith.addf %7, %9 : vector<8x32xf32>
    %c0_7 = arith.constant 0 : index
    %c0_8 = arith.constant 0 : index
    %11 = vector.load %arg4[%c0_7, %c0_8] : memref<32x32xbf16, #tpu.memory_space<vmem>>, vector<32x32xbf16>
    %cst_9 = arith.constant dense<0.000000e+00> : vector<8x32xf32>
    %12 = tpu.matmul %5, %11, %cst_9 {dimension_numbers = #tpu.dot_dimension_numbers<[1], [0], [0], [1], [0, 0, 1, 1], [], []>} : vector<8x32xbf16>, vector<32x32xbf16>, vector<8x32xf32> -> vector<8x32xf32>
    %c0_10 = arith.constant 0 : index
    %c0_11 = arith.constant 0 : index
    %13 = vector.load %arg6[%c0_10, %c0_11] : memref<1x32xf32, #tpu.memory_space<vmem>>, vector<1x32xf32>
    %14 = vector.broadcast %13 : vector<1x32xf32> to vector<8x32xf32>
    %15 = arith.addf %12, %14 : vector<8x32xf32>
    %c0_12 = arith.constant 0 : index
    %c0_13 = arith.constant 0 : index
    %16 = vector.load %arg12[%c0_12, %c0_13] : memref<1x32xf32, #tpu.memory_space<vmem>>, vector<1x32xf32>
    %17 = arith.mulf %10, %10 : vector<8x32xf32>
    %cst_14 = arith.constant dense<0.000000e+00> : vector<32xf32>
    %18 = vector.multi_reduction <add>, %17, %cst_14 [0] : vector<8x32xf32> to vector<32xf32>
    %19 = vector.shape_cast %18 : vector<32xf32> to vector<1x32xf32>
    %20 = arith.addf %16, %19 : vector<1x32xf32>
    %c0_15 = arith.constant 0 : index
    %c0_16 = arith.constant 0 : index
    %21 = vector.load %arg12[%c0_15, %c0_16] : memref<1x32xf32, #tpu.memory_space<vmem>>, vector<1x32xf32>
    tpu.vector_store %arg12[%c0_15, %c0_16], %20 {strides = array<i32>} : memref<1x32xf32, #tpu.memory_space<vmem>>, vector<1x32xf32>,
    %c0_17 = arith.constant 0 : index
    %c0_18 = arith.constant 0 : index
    %22 = vector.load %arg13[%c0_17, %c0_18] : memref<1x32xf32, #tpu.memory_space<vmem>>, vector<1x32xf32>
    %23 = arith.mulf %15, %15 : vector<8x32xf32>
    %cst_19 = arith.constant dense<0.000000e+00> : vector<32xf32>
    %24 = vector.multi_reduction <add>, %23, %cst_19 [0] : vector<8x32xf32> to vector<32xf32>
    %25 = vector.shape_cast %24 : vector<32xf32> to vector<1x32xf32>
    %26 = arith.addf %22, %25 : vector<1x32xf32>
    %c0_20 = arith.constant 0 : index
    %c0_21 = arith.constant 0 : index
    %27 = vector.load %arg13[%c0_20, %c0_21] : memref<1x32xf32, #tpu.memory_space<vmem>>, vector<1x32xf32>
    tpu.vector_store %arg13[%c0_20, %c0_21], %26 {strides = array<i32>} : memref<1x32xf32, #tpu.memory_space<vmem>>, vector<1x32xf32>,
    %c0_22 = arith.constant 0 : index
    %c0_23 = arith.constant 0 : index
    %28 = vector.load %arg11[%c0_22, %c0_23] : memref<32x32xf32, #tpu.memory_space<vmem>>, vector<32x32xf32>
    %29 = arith.truncf %10 : vector<8x32xf32> to vector<8x32xbf16>
    %30 = arith.truncf %15 : vector<8x32xf32> to vector<8x32xbf16>
    %cst_24 = arith.constant dense<0.000000e+00> : vector<32x32xf32>
    %31 = tpu.matmul %29, %30, %cst_24 {dimension_numbers = #tpu.dot_dimension_numbers<[0], [0], [1], [1], [0, 1, 1, 1], [], []>} : vector<8x32xbf16>, vector<8x32xbf16>, vector<32x32xf32> -> vector<32x32xf32>
    %32 = arith.addf %28, %31 : vector<32x32xf32>
    %c0_25 = arith.constant 0 : index
    %c0_26 = arith.constant 0 : index
    %33 = vector.load %arg11[%c0_25, %c0_26] : memref<32x32xf32, #tpu.memory_space<vmem>>, vector<32x32xf32>
    tpu.vector_store %arg11[%c0_25, %c0_26], %32 {strides = array<i32>} : memref<32x32xf32, #tpu.memory_space<vmem>>, vector<32x32xf32>,
    %c0_i32_27 = arith.constant 0 : i32
    %34 = arith.cmpi eq, %arg1, %c0_i32_27 : i32
    %35 = arith.extui %34 : i1 to i32
    %c0_i32_28 = arith.constant 0 : i32
    %36 = arith.cmpi ne, %35, %c0_i32_28 : i32
    scf.if %36 {
      %c0_29 = arith.constant 0 : index
      %c0_30 = arith.constant 0 : index
      %37 = vector.load %arg12[%c0_29, %c0_30] : memref<1x32xf32, #tpu.memory_space<vmem>>, vector<1x32xf32>
      %cst_31 = arith.constant 1.000000e-24 : f32
      %38 = vector.broadcast %cst_31 : f32 to vector<1x32xf32>
      %39 = arith.maximumf %37, %38 : vector<1x32xf32>
      %40 = math.rsqrt %39 : vector<1x32xf32>
      %c0_32 = arith.constant 0 : index
      %c0_33 = arith.constant 0 : index
      %41 = vector.load %arg7[%c0_32, %c0_33] : memref<1x32xf32, #tpu.memory_space<vmem>>, vector<1x32xf32>
      %42 = arith.mulf %40, %41 : vector<1x32xf32>
      %c0_34 = arith.constant 0 : index
      %c0_35 = arith.constant 0 : index
      %43 = vector.load %arg13[%c0_34, %c0_35] : memref<1x32xf32, #tpu.memory_space<vmem>>, vector<1x32xf32>
      %cst_36 = arith.constant 1.000000e-24 : f32
      %44 = vector.broadcast %cst_36 : f32 to vector<1x32xf32>
      %45 = arith.maximumf %43, %44 : vector<1x32xf32>
      %46 = math.rsqrt %45 : vector<1x32xf32>
      %47 = tpu.iota {dimensions = array<i32: 0>} : vector<32x32xi32>
      %48 = tpu.iota {dimensions = array<i32: 1>} : vector<32x32xi32>
      %49 = arith.cmpi eq, %47, %48 : vector<32x32xi32>
      %50 = arith.extui %49 : vector<32x32xi1> to vector<32x32xi32>
      %51 = arith.sitofp %50 : vector<32x32xi32> to vector<32x32xf32>
      %cst_37 = arith.constant dense<0.000000e+00> : vector<32x1xf32>
      %52 = tpu.matmul %51, %42, %cst_37 {dimension_numbers = #tpu.dot_dimension_numbers<[1], [1], [0], [0], [0, 0, 1, 0], [], []>} : vector<32x32xf32>, vector<1x32xf32>, vector<32x1xf32> -> vector<32x1xf32>
      %c0_38 = arith.constant 0 : index
      %c0_39 = arith.constant 0 : index
      %53 = vector.load %arg11[%c0_38, %c0_39] : memref<32x32xf32, #tpu.memory_space<vmem>>, vector<32x32xf32>
      %54 = vector.broadcast %46 : vector<1x32xf32> to vector<32x32xf32>
      %55 = arith.mulf %53, %54 : vector<32x32xf32>
      %56 = vector.broadcast %52 : vector<32x1xf32> to vector<32x32xf32>
      %57 = arith.mulf %55, %56 : vector<32x32xf32>
      %c0_40 = arith.constant 0 : index
      %c0_41 = arith.constant 0 : index
      %58 = vector.load %arg8[%c0_40, %c0_41] : memref<32x32xf32, #tpu.memory_space<vmem>>, vector<32x32xf32>
      %59 = arith.addf %57, %58 : vector<32x32xf32>
      %cst_42 = arith.constant dense<0xFF800000> : vector<32xf32>
      %60 = vector.multi_reduction <maximumf>, %59, %cst_42 [1] : vector<32x32xf32> to vector<32xf32>
      %61 = vector.shape_cast %60 : vector<32xf32> to vector<32x1xf32>
      %62 = vector.broadcast %61 : vector<32x1xf32> to vector<32x32xf32>
      %63 = arith.subf %59, %62 : vector<32x32xf32>
      %64 = math.exp %63 : vector<32x32xf32>
      %cst_43 = arith.constant dense<0.000000e+00> : vector<32xf32>
      %65 = vector.multi_reduction <add>, %64, %cst_43 [1] : vector<32x32xf32> to vector<32xf32>
      %66 = vector.shape_cast %65 : vector<32xf32> to vector<32x1xf32>
      %67 = vector.broadcast %66 : vector<32x1xf32> to vector<32x32xf32>
      %68 = arith.divf %64, %67 : vector<32x32xf32>
      %69 = arith.truncf %68 : vector<32x32xf32> to vector<32x32xbf16>
      %c0_44 = arith.constant 0 : index
      %c0_45 = arith.constant 0 : index
      %70 = vector.load %arg9[%c0_44, %c0_45] : memref<32x32xbf16, #tpu.memory_space<vmem>>, vector<32x32xbf16>
      %cst_46 = arith.constant dense<0.000000e+00> : vector<32x32xf32>
      %71 = tpu.matmul %69, %70, %cst_46 {dimension_numbers = #tpu.dot_dimension_numbers<[0], [0], [1], [1], [0, 1, 1, 1], [], []>} : vector<32x32xbf16>, vector<32x32xbf16>, vector<32x32xf32> -> vector<32x32xf32>
      %72 = arith.truncf %71 : vector<32x32xf32> to vector<32x32xbf16>
      %c0_47 = arith.constant 0 : index
      %c0_48 = arith.constant 0 : index
      %c0_49 = arith.constant 0 : index
      %73 = vector.load %arg10[%c0_47, %c0_48, %c0_49] : memref<1x32x32xbf16, #tpu.memory_space<vmem>>, vector<1x32x32xbf16>
      %74 = vector.shape_cast %73 : vector<1x32x32xbf16> to vector<32x32xbf16>
      %75 = vector.shape_cast %72 : vector<32x32xbf16> to vector<1x32x32xbf16>
      tpu.vector_store %arg10[%c0_47, %c0_48, %c0_49], %75 {strides = array<i32>} : memref<1x32x32xbf16, #tpu.memory_space<vmem>>, vector<1x32x32xbf16>,
    } else {
    }
    return
  }
  func.func @transform_0(%arg0: i32, %arg1: i32) -> (i32, i32, i32) {
    %c0_i32 = arith.constant 0 : i32
    %c0_i32_0 = arith.constant 0 : i32
    return %arg0, %arg1, %c0_i32 : i32, i32, i32
  }
  func.func @transform_1(%arg0: i32, %arg1: i32) -> (i32, i32) {
    %c0_i32 = arith.constant 0 : i32
    %c0_i32_0 = arith.constant 0 : i32
    %c0_i32_1 = arith.constant 0 : i32
    return %c0_i32, %c0_i32_0 : i32, i32
  }
  func.func @transform_2(%arg0: i32, %arg1: i32) -> (i32, i32) {
    %c0_i32 = arith.constant 0 : i32
    %c0_i32_0 = arith.constant 0 : i32
    %c0_i32_1 = arith.constant 0 : i32
    return %c0_i32, %c0_i32_0 : i32, i32
  }
  func.func @transform_3(%arg0: i32, %arg1: i32) -> (i32, i32) {
    %c0_i32 = arith.constant 0 : i32
    %c0_i32_0 = arith.constant 0 : i32
    %c0_i32_1 = arith.constant 0 : i32
    return %c0_i32, %c0_i32_0 : i32, i32
  }
  func.func @transform_4(%arg0: i32, %arg1: i32) -> (i32, i32) {
    %c0_i32 = arith.constant 0 : i32
    %c0_i32_0 = arith.constant 0 : i32
    %c0_i32_1 = arith.constant 0 : i32
    return %c0_i32, %c0_i32_0 : i32, i32
  }
  func.func @transform_5(%arg0: i32, %arg1: i32) -> (i32, i32) {
    %c0_i32 = arith.constant 0 : i32
    %c0_i32_0 = arith.constant 0 : i32
    %c0_i32_1 = arith.constant 0 : i32
    return %c0_i32, %c0_i32_0 : i32, i32
  }
  func.func @transform_6(%arg0: i32, %arg1: i32) -> (i32, i32) {
    %c0_i32 = arith.constant 0 : i32
    %c0_i32_0 = arith.constant 0 : i32
    %c0_i32_1 = arith.constant 0 : i32
    return %c0_i32, %c0_i32_0 : i32, i32
  }
  func.func @transform_7(%arg0: i32, %arg1: i32) -> (i32, i32) {
    %c0_i32 = arith.constant 0 : i32
    %c0_i32_0 = arith.constant 0 : i32
    %c0_i32_1 = arith.constant 0 : i32
    return %c0_i32, %c0_i32_0 : i32, i32
  }
  func.func @transform_8(%arg0: i32, %arg1: i32) -> (i32, i32, i32) {
    %c0_i32 = arith.constant 0 : i32
    %c0_i32_0 = arith.constant 0 : i32
    %c0_i32_1 = arith.constant 0 : i32
    return %arg0, %c0_i32, %c0_i32_0 : i32, i32, i32
  }
}

</mosaic_0001>

<llo_original>
// kernel: tpu_custom_call.1
$region0: #{tpu_custom_call.1}
  #allocation0 [shape = 'u32[]', space=smem, size = 0x4, offset = 0x4, fixed_abs, tag = 'smem constant byte address 0x4 - core index']
  #allocation1 [shape = 'u32[144,128]{1,0:T(1,128)}', space=vmem, size = 0x12000, scoped, tag = 'internal scratch']
  #allocation2 [shape = 'f32[32,32]{1,0:T(8,128)}', space=vmem, size = 0x4000, scoped, tag = 'scratch operand']
  #allocation3 [shape = 'f32[1,32]{1,0:T(1,128)}', space=vmem, size = 0x200, scoped, tag = 'scratch operand']
  #allocation4 [shape = 'f32[1,32]{1,0:T(1,128)}', space=vmem, size = 0x200, scoped, tag = 'scratch operand']
  %s0 = inlined_call_operand.hbm [shape: f32[2,8,32], index: 0, kind: input, shape index: {}]
  %s1 = inlined_call_operand.hbm [shape: bf16[32,32], index: 1, kind: input, shape index: {}]
  %s2 = inlined_call_operand.hbm [shape: bf16[32,32], index: 2, kind: input, shape index: {}]
  %s3 = inlined_call_operand.hbm [shape: f32[1,32], index: 3, kind: input, shape index: {}]
  %s4 = inlined_call_operand.hbm [shape: f32[1,32], index: 4, kind: input, shape index: {}]
  %s5 = inlined_call_operand.hbm [shape: f32[1,32], index: 5, kind: input, shape index: {}]
  %s6 = inlined_call_operand.hbm [shape: f32[32,32], index: 6, kind: input, shape index: {}]
  %s7 = inlined_call_operand.hbm [shape: bf16[32,32], index: 7, kind: input, shape index: {}]
  %s8 = inlined_call_operand.hbm [shape: bf16[2,32,32], index: 8, kind: output, shape index: {}]
  %s9 = sld [smem:[#allocation0]]
  $region105: #{tpu_custom_call.1} parent=0
    _
  %s11 = ssub.s32 1, %s9
  %s12 = scalar_select 0, %s11, %s9
  $region1: #{tpu_custom_call.1} parent=0
    #allocation5 [shape = 'u8[8192]{0}', space=vmem, size = 0x2000, scoped, tag = 'input window, operand 0']
    #allocation6 [shape = 's32[2]{0}', space=sflag, size = 0x8, scoped, tag = 'scoped memory for tpu_custom_call.1']
    #allocation7 [shape = 's32[2]{0}', space=sflag, size = 0x8, scoped, tag = 'scoped memory for tpu_custom_call.1']
    #allocation8 [shape = 'u8[8192]{0}', space=vmem, size = 0x2000, scoped, tag = 'input window, operand 1, single buffered']
    #allocation9 [shape = 's32[1]{0}', space=sflag, size = 0x4, scoped, tag = 'scoped memory for tpu_custom_call.1']
    #allocation10 [shape = 'u8[8192]{0}', space=vmem, size = 0x2000, scoped, tag = 'input window, operand 2, single buffered']
    #allocation11 [shape = 'u8[512]{0}', space=vmem, size = 0x400, scoped, tag = 'input window, operand 3, single buffered']
    #allocation12 [shape = 's32[1]{0}', space=sflag, size = 0x4, scoped, tag = 'scoped memory for tpu_custom_call.1']
    #allocation13 [shape = 'u8[512]{0}', space=vmem, size = 0x400, scoped, tag = 'input window, operand 4, single buffered']
    #allocation14 [shape = 'u8[512]{0}', space=vmem, size = 0x400, scoped, tag = 'input window, operand 5, single buffered']
    #allocation15 [shape = 's32[1]{0}', space=sflag, size = 0x4, scoped, tag = 'scoped memory for tpu_custom_call.1']
    #allocation16 [shape = 'u8[16384]{0}', space=vmem, size = 0x4000, scoped, tag = 'input window, operand 6, single buffered']
    #allocation17 [shape = 'u8[8192]{0}', space=vmem, size = 0x2000, scoped, tag = 'input window, operand 7, single buffered']
    #allocation18 [shape = 's32[1]{0}', space=sflag, size = 0x4, scoped, tag = 'scoped memory for tpu_custom_call.1']
    #allocation19 [shape = 'u8[16384]{0}', space=vmem, size = 0x4000, scoped, tag = 'output window, operand 0']
    %13 = vsyncpa [#allocation6], 0
    %s14 = scalar_lea.sflag [#allocation6], 1
    %15 = vsyncpa %s14, 0
    %16 = vsyncpa [#allocation9], 0
    %17 = vsyncpa [#allocation12], 0
    %18 = vsyncpa [#allocation15], 0
    %19 = vsyncpa [#allocation18], 0
    %20 = vsyncpa [#allocation7], 0
    %s21 = scalar_lea.sflag [#allocation7], 1
    %22 = vsyncpa %s21, 0
    loop: start=0, step=1, limit=4
    $region2: #{tpu_custom_call.1} parent=1 // loop_pre_header
      _
    $region3: #{tpu_custom_call.1} parent=1 // loop_header
      %s24 = sphi 0, %s28
      %p25 = scmp.ge.s32.totalorder %s24, 4
      %s31 = sphi 0, %s43
      %s32 = sphi 0, %s39
      %s33 = sphi 0, %s31
      %s34 = sphi 0, %s32
      %s35 = sphi 0, %s33
      %s36 = sphi 0, %s34
      %s48 = sphi 0, %s50
      %s51 = sphi 0, %s48
      %s52 = sphi 0, %s51
      %s68 = sphi 0, %s52
      %s72 = sphi 0, %s72
      %s74 = sphi 0, %s72
      %s75 = sphi 0, %s74
      %s89 = sphi 0, %s75
      %s93 = sphi 0, %s93
      %s95 = sphi 0, %s93
      %s96 = sphi 0, %s95
      %s110 = sphi 0, %s96
      %s114 = sphi 0, %s114
      %s116 = sphi 0, %s114
      %s117 = sphi 0, %s116
      %s131 = sphi 0, %s117
      %s135 = sphi 0, %s135
      %s137 = sphi 0, %s135
      %s138 = sphi 0, %s137
      %s152 = sphi 0, %s138
      %s156 = sphi 0, %s156
      %s158 = sphi 0, %s156
      %s159 = sphi 0, %s158
      %s173 = sphi 0, %s159
      %s177 = sphi 0, %s177
      %s179 = sphi 0, %s177
      %s180 = sphi 0, %s179
      %s194 = sphi 0, %s180
      %s198 = sphi 0, %s198
      %s200 = sphi 0, %s198
      %s201 = sphi 0, %s200
      %s215 = sphi 0, %s201
      %s221 = sphi 0, %s223
      %s224 = sphi 0, %s221
      %s225 = sphi 0, %s224
      %s241 = sphi 0, %s225
    $region4: #{tpu_custom_call.1} parent=1 // loop_header_branch
      %27 = sbr.rel (%p25) target = $region8
    $region5: #{tpu_custom_call.1} parent=1 // loop_body
      %s29 = ssub.s32 %s24, 1
      %s30 = ssub.s32 %s24, 2
      %s37 = sadd.s32 1, %s32
      %p38 = scmp.ge.s32.totalorder %s37, 1
      %s39 = scalar_select %p38, 0, %s37
      %s40 = sadd.s32 1, %s31
      %s41 = scalar_select %p38, %s40, %s31
      %p42 = scmp.ge.s32.totalorder %s41, 2
      %s43 = scalar_select %p42, 0, %s41
      %s44 = ssub.s32 %s31, %s43
      %s45 = ssub.s32 %s32, %s39
      %s46 = sor.u32 %s44, %s45
      %p47 = scmp.eq.s32.totalorder %s46, 0
      %s49 = sadd.s32 %s48, 1
      %s50 = scalar_select %p47, %s48, %s49
      %p53 = pneg %p47
      %p54 = scmp.eq.s32.totalorder %s24, 1
      %p55 = por %p53, %p54
      %p56 = scmp.ne.s32.totalorder %s48, %s51
      %p57 = scmp.eq.s32.totalorder %s24, 0
      %p58 = por %p56, %p57
      %p59 = scmp.ne.s32.totalorder %s48, %s51
      %p60 = scmp.eq.s32.totalorder %s29, 1
      %p61 = por %p59, %p60
      %p62 = scmp.ne.s32.totalorder %s51, %s52
      %p63 = scmp.eq.s32.totalorder %s29, 0
      %p64 = por %p62, %p63
      %p65 = scmp.ne.s32.totalorder %s51, %s52
      %p66 = scmp.eq.s32.totalorder %s30, 1
      %p67 = por %p65, %p66
      %p69 = scmp.ne.s32.totalorder %s52, %s68
      %p70 = scmp.eq.s32.totalorder %s30, 0
      %p71 = por %p69, %p70
      %s73 = sadd.s32 %s72, 1
      %p76 = scmp.eq.s32.totalorder %s24, 1
      %p77 = scmp.ne.s32.totalorder %s72, %s74
      %p78 = scmp.eq.s32.totalorder %s24, 0
      %p79 = por %p77, %p78
      %p80 = scmp.ne.s32.totalorder %s72, %s74
      %p81 = scmp.eq.s32.totalorder %s29, 1
      %p82 = por %p80, %p81
      %p83 = scmp.ne.s32.totalorder %s74, %s75
      %p84 = scmp.eq.s32.totalorder %s29, 0
      %p85 = por %p83, %p84
      %p86 = scmp.ne.s32.totalorder %s74, %s75
      %p87 = scmp.eq.s32.totalorder %s30, 1
      %p88 = por %p86, %p87
      %p90 = scmp.ne.s32.totalorder %s75, %s89
      %p91 = scmp.eq.s32.totalorder %s30, 0
      %p92 = por %p90, %p91
      %s94 = sadd.s32 %s93, 1
      %p97 = scmp.eq.s32.totalorder %s24, 1
      %p98 = scmp.ne.s32.totalorder %s93, %s95
      %p99 = scmp.eq.s32.totalorder %s24, 0
      %p100 = por %p98, %p99
      %p101 = scmp.ne.s32.totalorder %s93, %s95
      %p102 = scmp.eq.s32.totalorder %s29, 1
      %p103 = por %p101, %p102
      %p104 = scmp.ne.s32.totalorder %s95, %s96
      %p105 = scmp.eq.s32.totalorder %s29, 0
      %p106 = por %p104, %p105
      %p107 = scmp.ne.s32.totalorder %s95, %s96
      %p108 = scmp.eq.s32.totalorder %s30, 1
      %p109 = por %p107, %p108
      %p111 = scmp.ne.s32.totalorder %s96, %s110
      %p112 = scmp.eq.s32.totalorder %s30, 0
      %p113 = por %p111, %p112
      %s115 = sadd.s32 %s114, 1
      %p118 = scmp.eq.s32.totalorder %s24, 1
      %p119 = scmp.ne.s32.totalorder %s114, %s116
      %p120 = scmp.eq.s32.totalorder %s24, 0
      %p121 = por %p119, %p120
      %p122 = scmp.ne.s32.totalorder %s114, %s116
      %p123 = scmp.eq.s32.totalorder %s29, 1
      %p124 = por %p122, %p123
      %p125 = scmp.ne.s32.totalorder %s116, %s117
      %p126 = scmp.eq.s32.totalorder %s29, 0
      %p127 = por %p125, %p126
      %p128 = scmp.ne.s32.totalorder %s116, %s117
      %p129 = scmp.eq.s32.totalorder %s30, 1
      %p130 = por %p128, %p129
      %p132 = scmp.ne.s32.totalorder %s117, %s131
      %p133 = scmp.eq.s32.totalorder %s30, 0
      %p134 = por %p132, %p133
      %s136 = sadd.s32 %s135, 1
      %p139 = scmp.eq.s32.totalorder %s24, 1
      %p140 = scmp.ne.s32.totalorder %s135, %s137
      %p141 = scmp.eq.s32.totalorder %s24, 0
      %p142 = por %p140, %p141
      %p143 = scmp.ne.s32.totalorder %s135, %s137
      %p144 = scmp.eq.s32.totalorder %s29, 1
      %p145 = por %p143, %p144
      %p146 = scmp.ne.s32.totalorder %s137, %s138
      %p147 = scmp.eq.s32.totalorder %s29, 0
      %p148 = por %p146, %p147
      %p149 = scmp.ne.s32.totalorder %s137, %s138
      %p150 = scmp.eq.s32.totalorder %s30, 1
      %p151 = por %p149, %p150
      %p153 = scmp.ne.s32.totalorder %s138, %s152
      %p154 = scmp.eq.s32.totalorder %s30, 0
      %p155 = por %p153, %p154
      %s157 = sadd.s32 %s156, 1
      %p160 = scmp.eq.s32.totalorder %s24, 1
      %p161 = scmp.ne.s32.totalorder %s156, %s158
      %p162 = scmp.eq.s32.totalorder %s24, 0
      %p163 = por %p161, %p162
      %p164 = scmp.ne.s32.totalorder %s156, %s158
      %p165 = scmp.eq.s32.totalorder %s29, 1
      %p166 = por %p164, %p165
      %p167 = scmp.ne.s32.totalorder %s158, %s159
      %p168 = scmp.eq.s32.totalorder %s29, 0
      %p169 = por %p167, %p168
      %p170 = scmp.ne.s32.totalorder %s158, %s159
      %p171 = scmp.eq.s32.totalorder %s30, 1
      %p172 = por %p170, %p171
      %p174 = scmp.ne.s32.totalorder %s159, %s173
      %p175 = scmp.eq.s32.totalorder %s30, 0
      %p176 = por %p174, %p175
      %s178 = sadd.s32 %s177, 1
      %p181 = scmp.eq.s32.totalorder %s24, 1
      %p182 = scmp.ne.s32.totalorder %s177, %s179
      %p183 = scmp.eq.s32.totalorder %s24, 0
      %p184 = por %p182, %p183
      %p185 = scmp.ne.s32.totalorder %s177, %s179
      %p186 = scmp.eq.s32.totalorder %s29, 1
      %p187 = por %p185, %p186
      %p188 = scmp.ne.s32.totalorder %s179, %s180
      %p189 = scmp.eq.s32.totalorder %s29, 0
      %p190 = por %p188, %p189
      %p191 = scmp.ne.s32.totalorder %s179, %s180
      %p192 = scmp.eq.s32.totalorder %s30, 1
      %p193 = por %p191, %p192
      %p195 = scmp.ne.s32.totalorder %s180, %s194
      %p196 = scmp.eq.s32.totalorder %s30, 0
      %p197 = por %p195, %p196
      %s199 = sadd.s32 %s198, 1
      %p202 = scmp.eq.s32.totalorder %s24, 1
      %p203 = scmp.ne.s32.totalorder %s198, %s200
      %p204 = scmp.eq.s32.totalorder %s24, 0
      %p205 = por %p203, %p204
      %p206 = scmp.ne.s32.totalorder %s198, %s200
      %p207 = scmp.eq.s32.totalorder %s29, 1
      %p208 = por %p206, %p207
      %p209 = scmp.ne.s32.totalorder %s200, %s201
      %p210 = scmp.eq.s32.totalorder %s29, 0
      %p211 = por %p209, %p210
      %p212 = scmp.ne.s32.totalorder %s200, %s201
      %p213 = scmp.eq.s32.totalorder %s30, 1
      %p214 = por %p212, %p213
      %p216 = scmp.ne.s32.totalorder %s201, %s215
      %p217 = scmp.eq.s32.totalorder %s30, 0
      %p218 = por %p216, %p217
      %s219 = ssub.s32 %s31, %s43
      %p220 = scmp.eq.s32.totalorder %s219, 0
      %s222 = sadd.s32 %s221, 1
      %s223 = scalar_select %p220, %s221, %s222
      %p226 = pneg %p220
      %p227 = scmp.eq.s32.totalorder %s24, 1
      %p228 = por %p226, %p227
      %p229 = scmp.ne.s32.totalorder %s221, %s224
      %p230 = scmp.eq.s32.totalorder %s24, 0
      %p231 = por %p229, %p230
      %p232 = scmp.ne.s32.totalorder %s221, %s224
      %p233 = scmp.eq.s32.totalorder %s29, 1
      %p234 = por %p232, %p233
      %p235 = scmp.ne.s32.totalorder %s224, %s225
      %p236 = scmp.eq.s32.totalorder %s29, 0
      %p237 = por %p235, %p236
      %p238 = scmp.ne.s32.totalorder %s224, %s225
      %p239 = scmp.eq.s32.totalorder %s30, 1
      %p240 = por %p238, %p239
      %p242 = scmp.ne.s32.totalorder %s225, %s241
      %p243 = scmp.eq.s32.totalorder %s30, 0
      %p244 = por %p242, %p243
      %p245 = scmp.le.s32.totalorder 1, %s24
      %p246 = scmp.lt.s32.totalorder %s24, 3
      %p247 = pnand %p245, %p246
      %p248 = pneg %p247
      // Predicated region
      $region9: #{tpu_custom_call.1} parent=5 // pred_check
        _
      $region10: #{tpu_custom_call.1} parent=5 // pred_check_branch
        %250 = sbr.rel (%p247) target = $region12
      $region11: #{tpu_custom_call.1} parent=5 // pred_region
        %s251 = ssub.s32 %s24, 1
        // Predicated region
        $region13: #{tpu_custom_call.1} parent=11 // pred_check
          %p252 = pneg %p85
        $region14: #{tpu_custom_call.1} parent=11 // pred_check_branch
          %254 = sbr.rel (%p252) target = $region16
        $region15: #{tpu_custom_call.1} parent=11 // pred_region
          %s256 = ssub.s32 256, 256
          %257 = vsyncadd [#allocation9], %s256
          %s258 = sshll.u32 [#allocation8], 4
          %s259 = int_to_ptr.vmem [resolvable:$true] %s258
          %264 = dma.hbm_to_vmem [thread:$0]  %s1, 256, %s259, [#allocation9], 64, 64, 4
        $region16: #{tpu_custom_call.1} parent=11 // pred_fallthru
          _
        // Predicated region
        $region17: #{tpu_custom_call.1} parent=11 // pred_check
          %p265 = pneg %p106
        $region18: #{tpu_custom_call.1} parent=11 // pred_check_branch
          %267 = sbr.rel (%p265) target = $region20
        $region19: #{tpu_custom_call.1} parent=11 // pred_region
          %s269 = ssub.s32 256, 256
          %270 = vsyncadd [#allocation9], %s269
          %s271 = sshll.u32 [#allocation10], 4
          %s272 = int_to_ptr.vmem [resolvable:$true] %s271
          %277 = dma.hbm_to_vmem [thread:$0]  %s2, 256, %s272, [#allocation9], 64, 64, 4
        $region20: #{tpu_custom_call.1} parent=11 // pred_fallthru
          _
        // Predicated region
        $region21: #{tpu_custom_call.1} parent=11 // pred_check
          %p278 = pneg %p127
        $region22: #{tpu_custom_call.1} parent=11 // pred_check_branch
          %280 = sbr.rel (%p278) target = $region24
        $region23: #{tpu_custom_call.1} parent=11 // pred_region
          %s282 = ssub.s32 16, 16
          %283 = vsyncadd [#allocation12], %s282
          %s285 = sshll.u32 [#allocation11], 4
          %s286 = int_to_ptr.vmem [resolvable:$true] %s285
          %288 = dma.hbm_to_vmem [thread:$0]  %s3, 16, %s286, [#allocation12]
        $region24: #{tpu_custom_call.1} parent=11 // pred_fallthru
          _
        // Predicated region
        $region25: #{tpu_custom_call.1} parent=11 // pred_check
          %p289 = pneg %p148
        $region26: #{tpu_custom_call.1} parent=11 // pred_check_branch
          %291 = sbr.rel (%p289) target = $region28
        $region27: #{tpu_custom_call.1} parent=11 // pred_region
          %s293 = ssub.s32 16, 16
          %294 = vsyncadd [#allocation12], %s293
          %s296 = sshll.u32 [#allocation13], 4
          %s297 = int_to_ptr.vmem [resolvable:$true] %s296
          %299 = dma.hbm_to_vmem [thread:$0]  %s4, 16, %s297, [#allocation12]
        $region28: #{tpu_custom_call.1} parent=11 // pred_fallthru
          _
        // Predicated region
        $region29: #{tpu_custom_call.1} parent=11 // pred_check
          %p300 = pneg %p169
        $region30: #{tpu_custom_call.1} parent=11 // pred_check_branch
          %302 = sbr.rel (%p300) target = $region32
        $region31: #{tpu_custom_call.1} parent=11 // pred_region
          %s304 = ssub.s32 16, 16
          %305 = vsyncadd [#allocation15], %s304
          %s307 = sshll.u32 [#allocation14], 4
          %s308 = int_to_ptr.vmem [resolvable:$true] %s307
          %310 = dma.hbm_to_vmem [thread:$0]  %s5, 16, %s308, [#allocation15]
        $region32: #{tpu_custom_call.1} parent=11 // pred_fallthru
          _
        // Predicated region
        $region33: #{tpu_custom_call.1} parent=11 // pred_check
          %p311 = pneg %p190
        $region34: #{tpu_custom_call.1} parent=11 // pred_check_branch
          %313 = sbr.rel (%p311) target = $region36
        $region35: #{tpu_custom_call.1} parent=11 // pred_region
          %s315 = ssub.s32 512, 512
          %316 = vsyncadd [#allocation15], %s315
          %s317 = sshll.u32 [#allocation16], 4
          %s318 = int_to_ptr.vmem [resolvable:$true] %s317
          %323 = dma.hbm_to_vmem [thread:$0]  %s6, 512, %s318, [#allocation15], 128, 128, 8
        $region36: #{tpu_custom_call.1} parent=11 // pred_fallthru
          _
        // Predicated region
        $region37: #{tpu_custom_call.1} parent=11 // pred_check
          %p324 = pneg %p211
        $region38: #{tpu_custom_call.1} parent=11 // pred_check_branch
          %326 = sbr.rel (%p324) target = $region40
        $region39: #{tpu_custom_call.1} parent=11 // pred_region
          %s328 = ssub.s32 256, 256
          %329 = vsyncadd [#allocation18], %s328
          %s330 = sshll.u32 [#allocation17], 4
          %s331 = int_to_ptr.vmem [resolvable:$true] %s330
          %336 = dma.hbm_to_vmem [thread:$0]  %s7, 256, %s331, [#allocation18], 64, 64, 4
        $region40: #{tpu_custom_call.1} parent=11 // pred_fallthru
          _
      $region12: #{tpu_custom_call.1} parent=5 // pred_fallthru
        _
      %p337 = scmp.lt.s32.totalorder %s24, 2
      // Predicated region
      $region41: #{tpu_custom_call.1} parent=5 // pred_check
        %p338 = pneg %p337
      $region42: #{tpu_custom_call.1} parent=5 // pred_check_branch
        %340 = sbr.rel (%p338) target = $region44
      $region43: #{tpu_custom_call.1} parent=5 // pred_region
        // Predicated region
        $region45: #{tpu_custom_call.1} parent=43 // pred_check
          %p341 = pneg %p58
        $region46: #{tpu_custom_call.1} parent=43 // pred_check_branch
          %343 = sbr.rel (%p341) target = $region48
        $region47: #{tpu_custom_call.1} parent=43 // pred_region
          %s344 = sand.u32 %s48, 1
          %s345 = scalar_lea.sflag [#allocation6], %s344
          %s346 = sand.u32 %s48, 1
          %s347 = smul.addr %s346, 8
          %s348 = scalar_lea.vmem [#allocation5], %s347
          %s350 = ssub.s32 128, 128
          %351 = vsyncadd %s345, %s350
          %s352 = sadd.s32 %s32, %s31
          %s353 = smul.addr %s352, 128
          %s354 = scalar_lea.hbm %s0, %s353
          %s356 = sshll.u32 %s348, 4
          %s357 = int_to_ptr.vmem [resolvable:$true] %s356
          %359 = dma.hbm_to_vmem [thread:$0]  %s354, 128, %s357, %s345
        $region48: #{tpu_custom_call.1} parent=43 // pred_fallthru
          _
      $region44: #{tpu_custom_call.1} parent=5 // pred_fallthru
        _
      %p360 = scmp.le.s32.totalorder 1, %s24
      %p361 = scmp.lt.s32.totalorder %s24, 3
      %p362 = pnand %p360, %p361
      %p363 = pneg %p362
      // Predicated region
      $region49: #{tpu_custom_call.1} parent=5 // pred_check
        _
      $region50: #{tpu_custom_call.1} parent=5 // pred_check_branch
        %365 = sbr.rel (%p362) target = $region52
      $region51: #{tpu_custom_call.1} parent=5 // pred_region
        %s366 = ssub.s32 %s24, 1
        %s367 = sand.u32 %s51, 1
        %s368 = scalar_lea.sflag [#allocation6], %s367
        %s369 = sand.u32 %s51, 1
        %s370 = smul.addr %s369, 8
        %s371 = scalar_lea.vmem [#allocation5], %s370
        // Predicated region
        $region53: #{tpu_custom_call.1} parent=51 // pred_check
          %p372 = pneg %p64
        $region54: #{tpu_custom_call.1} parent=51 // pred_check_branch
          %374 = sbr.rel (%p372) target = $region56
        $region55: #{tpu_custom_call.1} parent=51 // pred_region
          %375 = dma.done %s368, 128
        $region56: #{tpu_custom_call.1} parent=51 // pred_fallthru
          _
        // Predicated region
        $region57: #{tpu_custom_call.1} parent=51 // pred_check
          %p376 = pneg %p85
        $region58: #{tpu_custom_call.1} parent=51 // pred_check_branch
          %378 = sbr.rel (%p376) target = $region60
        $region59: #{tpu_custom_call.1} parent=51 // pred_region
          %379 = dma.done [#allocation9], 256
        $region60: #{tpu_custom_call.1} parent=51 // pred_fallthru
          _
        // Predicated region
        $region61: #{tpu_custom_call.1} parent=51 // pred_check
          %p380 = pneg %p106
        $region62: #{tpu_custom_call.1} parent=51 // pred_check_branch
          %382 = sbr.rel (%p380) target = $region64
        $region63: #{tpu_custom_call.1} parent=51 // pred_region
          %383 = dma.done [#allocation9], 256
        $region64: #{tpu_custom_call.1} parent=51 // pred_fallthru
          _
        // Predicated region
        $region65: #{tpu_custom_call.1} parent=51 // pred_check
          %p384 = pneg %p127
        $region66: #{tpu_custom_call.1} parent=51 // pred_check_branch
          %386 = sbr.rel (%p384) target = $region68
        $region67: #{tpu_custom_call.1} parent=51 // pred_region
          %387 = dma.done [#allocation12], 16
        $region68: #{tpu_custom_call.1} parent=51 // pred_fallthru
          _
        // Predicated region
        $region69: #{tpu_custom_call.1} parent=51 // pred_check
          %p388 = pneg %p148
        $region70: #{tpu_custom_call.1} parent=51 // pred_check_branch
          %390 = sbr.rel (%p388) target = $region72
        $region71: #{tpu_custom_call.1} parent=51 // pred_region
          %391 = dma.done [#allocation12], 16
        $region72: #{tpu_custom_call.1} parent=51 // pred_fallthru
          _
        // Predicated region
        $region73: #{tpu_custom_call.1} parent=51 // pred_check
          %p392 = pneg %p169
        $region74: #{tpu_custom_call.1} parent=51 // pred_check_branch
          %394 = sbr.rel (%p392) target = $region76
        $region75: #{tpu_custom_call.1} parent=51 // pred_region
          %395 = dma.done [#allocation15], 16
        $region76: #{tpu_custom_call.1} parent=51 // pred_fallthru
          _
        // Predicated region
        $region77: #{tpu_custom_call.1} parent=51 // pred_check
          %p396 = pneg %p190
        $region78: #{tpu_custom_call.1} parent=51 // pred_check_branch
          %398 = sbr.rel (%p396) target = $region80
        $region79: #{tpu_custom_call.1} parent=51 // pred_region
          %399 = dma.done [#allocation15], 512
        $region80: #{tpu_custom_call.1} parent=51 // pred_fallthru
          _
        // Predicated region
        $region81: #{tpu_custom_call.1} parent=51 // pred_check
          %p400 = pneg %p211
        $region82: #{tpu_custom_call.1} parent=51 // pred_check_branch
          %402 = sbr.rel (%p400) target = $region84
        $region83: #{tpu_custom_call.1} parent=51 // pred_region
          %403 = dma.done [#allocation18], 256
        $region84: #{tpu_custom_call.1} parent=51 // pred_fallthru
          _
        %s404 = sand.u32 %s51, 1
        %s405 = scalar_lea.sflag [#allocation6], %s404
        %s406 = sand.u32 %s51, 1
        %s407 = smul.addr %s406, 8
        %s408 = scalar_lea.vmem [#allocation5], %s407
        %p409 = pneg %p64
        %p410 = pneg %p61
        %p411 = pneg %p85
        %p412 = pneg %p82
        %p413 = pneg %p106
        %p414 = pneg %p103
        %p415 = pneg %p127
        %p416 = pneg %p124
        %p417 = pneg %p148
        %p418 = pneg %p145
        %p419 = pneg %p169
        %p420 = pneg %p166
        %p421 = pneg %p190
        %p422 = pneg %p187
        %p423 = pneg %p211
        %p424 = pneg %p208
        %p425 = pneg %p237
        %p426 = pneg %p234
        %s427 = sand.u32 %s224, 1
        %s428 = scalar_lea.sflag [#allocation7], %s427
        %s429 = sand.u32 %s224, 1
        %s430 = smul.addr %s429, 16
        %s431 = scalar_lea.vmem [#allocation19], %s430
        %p433 = scmp.eq.s32.totalorder %s34, 0
        // Predicated region
        $region85: #{tpu_custom_call.1} parent=51 // pred_check
          %p434 = pneg %p433
        $region86: #{tpu_custom_call.1} parent=51 // pred_check_branch
          %436 = sbr.rel (%p434) target = $region88
        $region87: #{tpu_custom_call.1} parent=51 // pred_region
          %vm437 = vcmask 261120
          %438 = vst.msk [vmem:[#allocation2] sm:$0xff] %vm437, 0.0
          %439 = vst.msk [vmem:[#allocation2 + $0x8] sm:$0xff] %vm437, 0.0
          %440 = vst.msk [vmem:[#allocation2 + $0x10] sm:$0xff] %vm437, 0.0
          %441 = vst.msk [vmem:[#allocation2 + $0x18] sm:$0xff] %vm437, 0.0
          %vm442 = vcmask 253952
          %443 = vst.msk [vmem:[#allocation3] sm:$0x1] %vm442, 0.0
          %444 = vst.msk [vmem:[#allocation4] sm:$0x1] %vm442, 0.0
        $region88: #{tpu_custom_call.1} parent=51 // pred_fallthru
          _
        %v445 = vld [vmem:[%s371] sm:$0xff]
        %v446 = vpack.c.bf16 %v445, %v445
        %v447 = vld [vmem:[#allocation8] sm:$0xf]
        %v448 = vld [vmem:[#allocation8 + $0x4] sm:$0xf]
        %v449 = vld [vmem:[#allocation8 + $0x8] sm:$0xf]
        %v450 = vld [vmem:[#allocation8 + $0xc] sm:$0xf]
        %v451 = vld [vmem:[#allocation11] sm:$0x1]
        %v453 = vlaneseq
        %v454 = vshrl.u32 %v453, 7
        %v455 = vsub.s32 0, %v454
        %v456 = vrot.slane %v451, %v455
        %v462 = vunpack.c.l.b16 %v447
        %v463 = vunpack.c.l.b16 %v448
        %v464 = vunpack.c.l.b16 %v449
        %v465 = vunpack.c.l.b16 %v450
        %v466 = vpack.c.b16 %v463, %v462
        %v467 = vpack.c.b16 %v465, %v464
        %vm470 = vcmask 261120
        %v472 = vsel %vm470, %v446, 0
        %474 = vmatprep.subr.bf16.mxu0 0
        %475 = vmatpush1.bf16.msra.mxu0 %v466
        %476 = vmatprep.subr.bf16.mxu0 0
        %477 = vmatpush1.bf16.msra.mxu0 %v467
        %478 = vmatprep.subr.bf16.mxu0 0
        %479 = vmatpush1.bf16.msra.mxu0 0
        %480 = vmatprep.subr.bf16.mxu0 0
        %481 = vmatpush1.bf16.msra.mxu0 0
        %482 = vmatprep.subr.bf16.mxu0 0
        %483 = vmatpush1.bf16.msra.mxu0 0
        %484 = vmatprep.subr.bf16.mxu0 0
        %485 = vmatpush1.bf16.msra.mxu0 0
        %486 = vmatprep.subr.bf16.mxu0 0
        %487 = vmatpush1.bf16.msra.mxu0 0
        %488 = vmatprep.subr.bf16.mxu0 0
        %489 = vmatpush1.bf16.msra.mxu0 0
        %490 = vmatprep.subr.bf16.mxu0 0
        %491 = vmatpush1.bf16.msra.mxu0 0
        %492 = vmatprep.subr.bf16.mxu0 0
        %493 = vmatpush1.bf16.msra.mxu0 0
        %494 = vmatprep.subr.bf16.mxu0 0
        %495 = vmatpush1.bf16.msra.mxu0 0
        %496 = vmatprep.subr.bf16.mxu0 0
        %497 = vmatpush1.bf16.msra.mxu0 0
        %498 = vmatprep.subr.bf16.mxu0 0
        %499 = vmatpush1.bf16.msra.mxu0 0
        %500 = vmatprep.subr.bf16.mxu0 0
        %501 = vmatpush1.bf16.msra.mxu0 0
        %502 = vmatprep.subr.bf16.mxu0 0
        %503 = vmatpush1.bf16.msra.mxu0 0
        %504 = vmatprep.subr.bf16.mxu0 0
        %505 = vmatpush1.bf16.msra.mxu0 0
        %506 = vmatprep.mubr.bf16.mxu0 0
        %507 = vmatmul.mubr.bf16.gmra.mrb[0].mxu0 %v472
        %v508 = vpop.f32.mrb[0].mxu0
        %v509 = vadd.f32 %v456, %v508
        %v510 = vpop.f32.mrb[0].mxu0
        %v511 = vpop.f32.mrb[0].mxu0
        %v512 = vpop.f32.mrb[0].mxu0
        %513 = vdwg.mxu0
        %v514 = vld [vmem:[#allocation10] sm:$0xf]
        %v515 = vld [vmem:[#allocation10 + $0x4] sm:$0xf]
        %v516 = vld [vmem:[#allocation10 + $0x8] sm:$0xf]
        %v517 = vld [vmem:[#allocation10 + $0xc] sm:$0xf]
        %v518 = vld [vmem:[#allocation13] sm:$0x1]
        %v520 = vlaneseq
        %v521 = vshrl.u32 %v520, 7
        %v522 = vsub.s32 0, %v521
        %v523 = vrot.slane %v518, %v522
        %v529 = vunpack.c.l.b16 %v514
        %v530 = vunpack.c.l.b16 %v515
        %v531 = vunpack.c.l.b16 %v516
        %v532 = vunpack.c.l.b16 %v517
        %v533 = vpack.c.b16 %v530, %v529
        %v534 = vpack.c.b16 %v532, %v531
        %537 = vmatprep.subr.bf16.mxu0 0
        %538 = vmatpush1.bf16.msra.mxu0 %v533
        %539 = vmatprep.subr.bf16.mxu0 0
        %540 = vmatpush1.bf16.msra.mxu0 %v534
        %541 = vmatprep.subr.bf16.mxu0 0
        %542 = vmatpush1.bf16.msra.mxu0 0
        %543 = vmatprep.subr.bf16.mxu0 0
        %544 = vmatpush1.bf16.msra.mxu0 0
        %545 = vmatprep.subr.bf16.mxu0 0
        %546 = vmatpush1.bf16.msra.mxu0 0
        %547 = vmatprep.subr.bf16.mxu0 0
        %548 = vmatpush1.bf16.msra.mxu0 0
        %549 = vmatprep.subr.bf16.mxu0 0
        %550 = vmatpush1.bf16.msra.mxu0 0
        %551 = vmatprep.subr.bf16.mxu0 0
        %552 = vmatpush1.bf16.msra.mxu0 0
        %553 = vmatprep.subr.bf16.mxu0 0
        %554 = vmatpush1.bf16.msra.mxu0 0
        %555 = vmatprep.subr.bf16.mxu0 0
        %556 = vmatpush1.bf16.msra.mxu0 0
        %557 = vmatprep.subr.bf16.mxu0 0
        %558 = vmatpush1.bf16.msra.mxu0 0
        %559 = vmatprep.subr.bf16.mxu0 0
        %560 = vmatpush1.bf16.msra.mxu0 0
        %561 = vmatprep.subr.bf16.mxu0 0
        %562 = vmatpush1.bf16.msra.mxu0 0
        %563 = vmatprep.subr.bf16.mxu0 0
        %564 = vmatpush1.bf16.msra.mxu0 0
        %565 = vmatprep.subr.bf16.mxu0 0
        %566 = vmatpush1.bf16.msra.mxu0 0
        %567 = vmatprep.subr.bf16.mxu0 0
        %568 = vmatpush1.bf16.msra.mxu0 0
        %569 = vmatprep.mubr.bf16.mxu0 0
        %570 = vmatmul.mubr.bf16.gmra.mrb[0].mxu0 %v472
        %v571 = vpop.f32.mrb[0].mxu0
        %v572 = vadd.f32 %v523, %v571
        %v573 = vpop.f32.mrb[0].mxu0
        %v574 = vpop.f32.mrb[0].mxu0
        %v575 = vpop.f32.mrb[0].mxu0
        %576 = vdwg.mxu0
        %v577 = vld [vmem:[#allocation3] sm:$0x1]
        %v578 = vmul.f32 %v509, %v509
        %v579 = vsel %vm470, %v578, 0.0
        %v580 = vrot.slane %v579, 4
        %v581 = vadd.f32 %v579, %v580
        %v582 = vrot.slane %v581, 2
        %v583 = vadd.f32 %v581, %v582
        %v584 = vrot.slane %v583, 1
        %v585 = vadd.f32 %v583, %v584
        %v586 = vadd.f32 %v577, %v585
        %vm587 = vcmask 253952
        %588 = vst.msk [vmem:[#allocation3] sm:$0x1] %vm587, %v586
        %v589 = vld [vmem:[#allocation4] sm:$0x1]
        %v590 = vmul.f32 %v572, %v572
        %v591 = vsel %vm470, %v590, 0.0
        %v592 = vrot.slane %v591, 4
        %v593 = vadd.f32 %v591, %v592
        %v594 = vrot.slane %v593, 2
        %v595 = vadd.f32 %v593, %v594
        %v596 = vrot.slane %v595, 1
        %v597 = vadd.f32 %v595, %v596
        %v598 = vadd.f32 %v589, %v597
        %599 = vst.msk [vmem:[#allocation4] sm:$0x1] %vm587, %v598
        %v600 = vld [vmem:[#allocation2] sm:$0xff]
        %v601 = vld [vmem:[#allocation2 + $0x8] sm:$0xff]
        %v602 = vld [vmem:[#allocation2 + $0x10] sm:$0xff]
        %v603 = vld [vmem:[#allocation2 + $0x18] sm:$0xff]
        %v604 = vpack.c.bf16 %v509, %v509
        %v605 = vpack.c.bf16 %v572, %v572
        %606 = vxpose.xlu0.c.b16.start [1/8] %v604, 128
        %607 = vxpose.xlu0.c.b16.cont [2/8] 0, 128
        %608 = vxpose.xlu0.c.b16.cont [3/8] 0, 128
        %609 = vxpose.xlu0.c.b16.cont [4/8] 0, 128
        %610 = vxpose.xlu0.c.b16.cont [5/8] 0, 128
        %611 = vxpose.xlu0.c.b16.cont [6/8] 0, 128
        %612 = vxpose.xlu0.c.b16.cont [7/8] 0, 128
        %613 = vxpose.xlu0.c.b16.end [8/8] 0, 128
        %v614 = vpop.trf.xlu0
        %v615 = vpop.trf.xlu0
        %v616 = vpop.trf.xlu0
        %v617 = vpop.trf.xlu0
        %v618 = vpop.trf.xlu0
        %v619 = vpop.trf.xlu0
        %v620 = vpop.trf.xlu0
        %v621 = vpop.trf.xlu0
        %vm622 = vcmask 64512
        %v624 = vsel %vm622, %v614, 0
        %v627 = vsel %vm622, %v615, 0
        %vm629 = vcmask 1043456
        %v631 = vsel %vm629, %v605, 0
        %633 = vmatprep.subr.bf16.mxu0 0
        %634 = vmatpush1.bf16.msra.mxu0 %v631
        %635 = vmatprep.subr.bf16.mxu0 0
        %636 = vmatpush1.bf16.msra.mxu0 0
        %637 = vmatprep.subr.bf16.mxu0 0
        %638 = vmatpush1.bf16.msra.mxu0 0
        %639 = vmatprep.subr.bf16.mxu0 0
        %640 = vmatpush1.bf16.msra.mxu0 0
        %641 = vmatprep.subr.bf16.mxu0 0
        %642 = vmatpush1.bf16.msra.mxu0 0
        %643 = vmatprep.subr.bf16.mxu0 0
        %644 = vmatpush1.bf16.msra.mxu0 0
        %645 = vmatprep.subr.bf16.mxu0 0
        %646 = vmatpush1.bf16.msra.mxu0 0
        %647 = vmatprep.subr.bf16.mxu0 0
        %648 = vmatpush1.bf16.msra.mxu0 0
        %649 = vmatprep.subr.bf16.mxu0 0
        %650 = vmatpush1.bf16.msra.mxu0 0
        %651 = vmatprep.subr.bf16.mxu0 0
        %652 = vmatpush1.bf16.msra.mxu0 0
        %653 = vmatprep.subr.bf16.mxu0 0
        %654 = vmatpush1.bf16.msra.mxu0 0
        %655 = vmatprep.subr.bf16.mxu0 0
        %656 = vmatpush1.bf16.msra.mxu0 0
        %657 = vmatprep.subr.bf16.mxu0 0
        %658 = vmatpush1.bf16.msra.mxu0 0
        %659 = vmatprep.subr.bf16.mxu0 0
        %660 = vmatpush1.bf16.msra.mxu0 0
        %661 = vmatprep.subr.bf16.mxu0 0
        %662 = vmatpush1.bf16.msra.mxu0 0
        %663 = vmatprep.subr.bf16.mxu0 0
        %664 = vmatpush1.bf16.msra.mxu0 0
        %665 = vmatprep.mubr.bf16.mxu0 0
        %666 = vmatmul.mubr.bf16.gmra.mrb[0].mxu0 %v624
        %v667 = vpop.f32.mrb[0].mxu0
        %v668 = vadd.f32 0.0, %v667
        %v669 = vpop.f32.mrb[0].mxu0
        %v670 = vpop.f32.mrb[0].mxu0
        %v671 = vadd.f32 0.0, %v670
        %v672 = vpop.f32.mrb[0].mxu0
        %673 = vmatprep.mubr.bf16.mxu0 0
        %674 = vmatmul.mubr.bf16.gmra.mrb[0].mxu0 %v627
        %v675 = vpop.f32.mrb[0].mxu0
        %v676 = vadd.f32 0.0, %v675
        %v677 = vpop.f32.mrb[0].mxu0
        %v678 = vpop.f32.mrb[0].mxu0
        %v679 = vadd.f32 0.0, %v678
        %v680 = vpop.f32.mrb[0].mxu0
        %681 = vdwg.mxu0
        %v682 = vadd.f32 %v600, %v668
        %v683 = vadd.f32 %v601, %v671
        %v684 = vadd.f32 %v602, %v676
        %v685 = vadd.f32 %v603, %v679
        %686 = vst.msk [vmem:[#allocation2] sm:$0xff] %vm470, %v682
        %687 = vst.msk [vmem:[#allocation2 + $0x8] sm:$0xff] %vm470, %v683
        %688 = vst.msk [vmem:[#allocation2 + $0x10] sm:$0xff] %vm470, %v684
        %689 = vst.msk [vmem:[#allocation2 + $0x18] sm:$0xff] %vm470, %v685
        // Predicated region
        $region89: #{tpu_custom_call.1} parent=51 // pred_check
          %p690 = pneg %p433
        $region90: #{tpu_custom_call.1} parent=51 // pred_check_branch
          %692 = sbr.rel (%p690) target = $region92
        $region91: #{tpu_custom_call.1} parent=51 // pred_region
          %v693 = vld [vmem:[#allocation3] sm:$0x1]
          %v694 = vmax.f32 %v693, 1e-24
          %v695 = vrsqrt.pop %v694
          %v696 = vld [vmem:[#allocation14] sm:$0x1]
          %v697 = vmul.f32 %v695, %v696
          %v698 = vld [vmem:[#allocation4] sm:$0x1]
          %v699 = vmax.f32 %v698, 1e-24
          %v700 = vrsqrt.pop %v699
          %v701 = vlaneseq
          %v702 = vshrl.u32 %v701, 7
          %v703 = vadd.s32 %v702, 8
          %v704 = vadd.s32 %v702, 16
          %v705 = vadd.s32 %v702, 24
          %v706 = vlaneseq
          %v707 = vand.u32 %v706, 127
          %vm708 = vcmp.eq.s32.totalorder %v702, %v707
          %vm709 = vcmp.eq.s32.totalorder %v703, %v707
          %vm710 = vcmp.eq.s32.totalorder %v704, %v707
          %vm711 = vcmp.eq.s32.totalorder %v705, %v707
          %v712 = vsel %vm708, 1, 0
          %v713 = vsel %vm709, 1, 0
          %v714 = vsel %vm710, 1, 0
          %v715 = vsel %vm711, 1, 0
          %v716 = vcvt.s32.f32 %v712
          %v717 = vcvt.s32.f32 %v713
          %v718 = vcvt.s32.f32 %v714
          %v719 = vcvt.s32.f32 %v715
          %v721 = vlaneseq
          %v722 = vshrl.u32 %v721, 7
          %v723 = vsub.s32 0, %v722
          %v724 = vrot.slane %v697, %v723
          %v726 = vmul.f32 %v716, %v724
          %v727 = vmul.f32 %v717, %v724
          %v728 = vmul.f32 %v718, %v724
          %v729 = vmul.f32 %v719, %v724
          %v730 = vsel %vm470, %v726, 0.0
          %731 = vadd.xlane.f32.xlu0 %v730
          %v732 = vpop.xlane.xlu0 %731
          %v733 = vsel %vm470, %v727, 0.0
          %734 = vadd.xlane.f32.xlu0 %v733
          %v735 = vpop.xlane.xlu0 %734
          %v736 = vsel %vm470, %v728, 0.0
          %737 = vadd.xlane.f32.xlu0 %v736
          %v738 = vpop.xlane.xlu0 %737
          %v739 = vsel %vm470, %v729, 0.0
          %740 = vadd.xlane.f32.xlu0 %v739
          %v741 = vpop.xlane.xlu0 %740
          %v742 = vld [vmem:[#allocation2] sm:$0xff]
          %v743 = vld [vmem:[#allocation2 + $0x8] sm:$0xff]
          %v744 = vld [vmem:[#allocation2 + $0x10] sm:$0xff]
          %v745 = vld [vmem:[#allocation2 + $0x18] sm:$0xff]
          %v747 = vlaneseq
          %v748 = vshrl.u32 %v747, 7
          %v749 = vsub.s32 0, %v748
          %v750 = vrot.slane %v700, %v749
          %v752 = vmul.f32 %v742, %v750
          %v753 = vmul.f32 %v743, %v750
          %v754 = vmul.f32 %v744, %v750
          %v755 = vmul.f32 %v745, %v750
          %v756 = vmul.f32 %v752, %v732
          %v757 = vmul.f32 %v753, %v735
          %v758 = vmul.f32 %v754, %v738
          %v759 = vmul.f32 %v755, %v741
          %v760 = vld [vmem:[#allocation16] sm:$0xff]
          %v761 = vld [vmem:[#allocation16 + $0x8] sm:$0xff]
          %v762 = vld [vmem:[#allocation16 + $0x10] sm:$0xff]
          %v763 = vld [vmem:[#allocation16 + $0x18] sm:$0xff]
          %v764 = vadd.f32 %v756, %v760
          %v765 = vadd.f32 %v757, %v761
          %v766 = vadd.f32 %v758, %v762
          %v767 = vadd.f32 %v759, %v763
          %v768 = vsel %vm470, %v764, -inf
          %769 = vmax.xlane.f32.xlu0 %v768
          %v770 = vpop.xlane.xlu0 %769
          %v771 = vsel %vm470, %v765, -inf
          %772 = vmax.xlane.f32.xlu0 %v771
          %v773 = vpop.xlane.xlu0 %772
          %v774 = vsel %vm470, %v766, -inf
          %775 = vmax.xlane.f32.xlu0 %v774
          %v776 = vpop.xlane.xlu0 %775
          %v777 = vsel %vm470, %v767, -inf
          %778 = vmax.xlane.f32.xlu0 %v777
          %v779 = vpop.xlane.xlu0 %778
          %v780 = vsub.f32 %v764, %v770
          %v781 = vsub.f32 %v765, %v773
          %v782 = vsub.f32 %v766, %v776
          %v783 = vsub.f32 %v767, %v779
          %v784 = vmul.f32 %v780, 1.442695
          %v785 = vpow.pop %v784
          %v786 = vmul.f32 %v781, 1.442695
          %v787 = vpow.pop %v786
          %v788 = vmul.f32 %v782, 1.442695
          %v789 = vpow.pop %v788
          %v790 = vmul.f32 %v783, 1.442695
          %v791 = vpow.pop %v790
          %v792 = vsel %vm470, %v785, 0.0
          %793 = vadd.xlane.f32.xlu0 %v792
          %v794 = vpop.xlane.xlu0 %793
          %v795 = vsel %vm470, %v787, 0.0
          %796 = vadd.xlane.f32.xlu0 %v795
          %v797 = vpop.xlane.xlu0 %796
          %v798 = vsel %vm470, %v789, 0.0
          %799 = vadd.xlane.f32.xlu0 %v798
          %v800 = vpop.xlane.xlu0 %799
          %v801 = vsel %vm470, %v791, 0.0
          %802 = vadd.xlane.f32.xlu0 %v801
          %v803 = vpop.xlane.xlu0 %802
          %v804 = vrcp.pop %v794
          %v805 = vmul.f32 %v785, %v804
          %v806 = vrcp.pop %v797
          %v807 = vmul.f32 %v787, %v806
          %v808 = vrcp.pop %v800
          %v809 = vmul.f32 %v789, %v808
          %v810 = vrcp.pop %v803
          %v811 = vmul.f32 %v791, %v810
          %v812 = vpack.c.bf16 %v807, %v805
          %v813 = vpack.c.bf16 %v811, %v809
          %v814 = vld [vmem:[#allocation17] sm:$0xf]
          %v815 = vld [vmem:[#allocation17 + $0x4] sm:$0xf]
          %v816 = vld [vmem:[#allocation17 + $0x8] sm:$0xf]
          %v817 = vld [vmem:[#allocation17 + $0xc] sm:$0xf]
          %818 = vxpose.xlu0.c.b16.start [1/8] %v812, 128
          %819 = vxpose.xlu0.c.b16.cont [2/8] %v813, 128
          %820 = vxpose.xlu0.c.b16.cont [3/8] 0, 128
          %821 = vxpose.xlu0.c.b16.cont [4/8] 0, 128
          %822 = vxpose.xlu0.c.b16.cont [5/8] 0, 128
          %823 = vxpose.xlu0.c.b16.cont [6/8] 0, 128
          %824 = vxpose.xlu0.c.b16.cont [7/8] 0, 128
          %825 = vxpose.xlu0.c.b16.end [8/8] 0, 128
          %v826 = vpop.trf.xlu0
          %v827 = vpop.trf.xlu0
          %v828 = vpop.trf.xlu0
          %v829 = vpop.trf.xlu0
          %v830 = vpop.trf.xlu0
          %v831 = vpop.trf.xlu0
          %v832 = vpop.trf.xlu0
          %v833 = vpop.trf.xlu0
          %v838 = vunpack.c.l.b16 %v814
          %v839 = vunpack.c.l.b16 %v815
          %v840 = vunpack.c.l.b16 %v816
          %v841 = vunpack.c.l.b16 %v817
          %v842 = vpack.c.b16 %v839, %v838
          %v843 = vpack.c.b16 %v841, %v840
          %v847 = vsel %vm470, %v826, 0
          %v850 = vsel %vm470, %v827, 0
          %852 = vmatprep.subr.bf16.mxu0 0
          %853 = vmatpush1.bf16.msra.mxu0 %v842
          %854 = vmatprep.subr.bf16.mxu0 0
          %855 = vmatpush1.bf16.msra.mxu0 %v843
          %856 = vmatprep.subr.bf16.mxu0 0
          %857 = vmatpush1.bf16.msra.mxu0 0
          %858 = vmatprep.subr.bf16.mxu0 0
          %859 = vmatpush1.bf16.msra.mxu0 0
          %860 = vmatprep.subr.bf16.mxu0 0
          %861 = vmatpush1.bf16.msra.mxu0 0
          %862 = vmatprep.subr.bf16.mxu0 0
          %863 = vmatpush1.bf16.msra.mxu0 0
          %864 = vmatprep.subr.bf16.mxu0 0
          %865 = vmatpush1.bf16.msra.mxu0 0
          %866 = vmatprep.subr.bf16.mxu0 0
          %867 = vmatpush1.bf16.msra.mxu0 0
          %868 = vmatprep.subr.bf16.mxu0 0
          %869 = vmatpush1.bf16.msra.mxu0 0
          %870 = vmatprep.subr.bf16.mxu0 0
          %871 = vmatpush1.bf16.msra.mxu0 0
          %872 = vmatprep.subr.bf16.mxu0 0
          %873 = vmatpush1.bf16.msra.mxu0 0
          %874 = vmatprep.subr.bf16.mxu0 0
          %875 = vmatpush1.bf16.msra.mxu0 0
          %876 = vmatprep.subr.bf16.mxu0 0
          %877 = vmatpush1.bf16.msra.mxu0 0
          %878 = vmatprep.subr.bf16.mxu0 0
          %879 = vmatpush1.bf16.msra.mxu0 0
          %880 = vmatprep.subr.bf16.mxu0 0
          %881 = vmatpush1.bf16.msra.mxu0 0
          %882 = vmatprep.subr.bf16.mxu0 0
          %883 = vmatpush1.bf16.msra.mxu0 0
          %884 = vmatprep.mubr.bf16.mxu0 0
          %885 = vmatmul.mubr.bf16.gmra.mrb[0].mxu0 %v847
          %v886 = vpop.f32.mrb[0].mxu0
          %v887 = vadd.f32 0.0, %v886
          %v888 = vpop.f32.mrb[0].mxu0
          %v889 = vpop.f32.mrb[0].mxu0
          %v890 = vadd.f32 0.0, %v889
          %v891 = vpop.f32.mrb[0].mxu0
          %892 = vmatprep.mubr.bf16.mxu0 0
          %893 = vmatmul.mubr.bf16.gmra.mrb[0].mxu0 %v850
          %v894 = vpop.f32.mrb[0].mxu0
          %v895 = vadd.f32 0.0, %v894
          %v896 = vpop.f32.mrb[0].mxu0
          %v897 = vpop.f32.mrb[0].mxu0
          %v898 = vadd.f32 0.0, %v897
          %v899 = vpop.f32.mrb[0].mxu0
          %900 = vdwg.mxu0
          %v901 = vpack.c.bf16 %v890, %v887
          %v902 = vpack.c.bf16 %v898, %v895
          %v905 = vunpack.c.l.b16 %v901
          %v906 = vunpack.c.h.b16 %v901
          %v907 = vunpack.c.l.b16 %v902
          %v908 = vunpack.c.h.b16 %v902
          %v909 = vpack.c.b16 %v905, %v905
          %v910 = vpack.c.b16 %v906, %v906
          %v911 = vpack.c.b16 %v907, %v907
          %v912 = vpack.c.b16 %v908, %v908
          %vm917 = vcmask 257024
          %918 = vst.msk [vmem:[%s431] sm:$0xf] %vm917, %v909
          %919 = vst.msk [vmem:[%s431 + $0x4] sm:$0xf] %vm917, %v910
          %920 = vst.msk [vmem:[%s431 + $0x8] sm:$0xf] %vm917, %v911
          %921 = vst.msk [vmem:[%s431 + $0xc] sm:$0xf] %vm917, %v912
        $region92: #{tpu_custom_call.1} parent=51 // pred_fallthru
          _
        %s922 = sand.u32 %s224, 1
        %s923 = scalar_lea.sflag [#allocation7], %s922
        %s924 = sand.u32 %s224, 1
        %s925 = smul.addr %s924, 16
        %s926 = scalar_lea.vmem [#allocation19], %s925
        // Predicated region
        $region93: #{tpu_custom_call.1} parent=51 // pred_check
          %p927 = pneg %p234
        $region94: #{tpu_custom_call.1} parent=51 // pred_check_branch
          %929 = sbr.rel (%p927) target = $region96
        $region95: #{tpu_custom_call.1} parent=51 // pred_region
          %s931 = ssub.s32 256, 256
          %932 = vsyncadd %s923, %s931
          %s933 = smul.addr %s33, 4
          %s934 = smul.addr %s933, 64
          %s935 = scalar_lea.hbm %s8, %s934
          %s936 = sshll.u32 %s926, 4
          %s937 = int_to_ptr.vmem [resolvable:$true] %s936
          %942 = dma.vmem_to_hbm [thread:$0]  %s937, 256, %s935, %s923, 64, 64, 4
        $region96: #{tpu_custom_call.1} parent=51 // pred_fallthru
          _
      $region52: #{tpu_custom_call.1} parent=5 // pred_fallthru
        _
      %p943 = scmp.le.s32.totalorder 2, %s24
      // Predicated region
      $region97: #{tpu_custom_call.1} parent=5 // pred_check
        %p944 = pneg %p943
      $region98: #{tpu_custom_call.1} parent=5 // pred_check_branch
        %946 = sbr.rel (%p944) target = $region100
      $region99: #{tpu_custom_call.1} parent=5 // pred_region
        %s947 = ssub.s32 %s24, 2
        // Predicated region
        $region101: #{tpu_custom_call.1} parent=99 // pred_check
          %p948 = pneg %p240
        $region102: #{tpu_custom_call.1} parent=99 // pred_check_branch
          %950 = sbr.rel (%p948) target = $region104
        $region103: #{tpu_custom_call.1} parent=99 // pred_region
          %s951 = sand.u32 %s225, 1
          %s952 = scalar_lea.sflag [#allocation7], %s951
          %s953 = sand.u32 %s225, 1
          %s954 = smul.addr %s953, 16
          %s955 = scalar_lea.vmem [#allocation19], %s954
          %956 = dma.done %s952, 256
        $region104: #{tpu_custom_call.1} parent=99 // pred_fallthru
          _
      $region100: #{tpu_custom_call.1} parent=5 // pred_fallthru
        _
    $region6: #{tpu_custom_call.1} parent=1 // loop_footer
      %s28 = sadd.s32 1, %s24
    $region7: #{tpu_custom_call.1} parent=1 // loop_footer_branch
      %23 = sbr.rel target = $region3
    $region8: #{tpu_custom_call.1} parent=1 // loop_exit
      _
    %957 = vsyncpa [#allocation6], 1
    %s958 = scalar_lea.sflag [#allocation6], 1
    %959 = vsyncpa %s958, 1
    %960 = vsyncpa [#allocation9], 1
    %961 = vsyncpa [#allocation12], 1
    %962 = vsyncpa [#allocation15], 1
    %963 = vsyncpa [#allocation18], 1
    %964 = vsyncpa [#allocation7], 1
    %s965 = scalar_lea.sflag [#allocation7], 1
    %966 = vsyncpa %s965, 1

</llo_original>
